<compile_context>
chip_gen: v7x
topology: tpu7x:2x2x1
jax: 0.10.0
libtpu: 0.0.40
codegen_flags: <defaults>
</compile_context>

<pallas_src>
import functools

import jax
import jax.numpy as jnp
from jax.experimental import pallas as pl
from jax.experimental.pallas import tpu as pltpu

_LANE = 128   # lane width -> weight N / hidden K padding target


def _round_up(n, m):
    return ((n + m - 1) // m) * m


def _pick_tile(dim, candidates=(512, 256, 128)):
    """Largest candidate tile that exactly divides `dim` (else the full dim)."""
    for c in candidates:
        if dim % c == 0:
            return c
    return dim


def _vmem_capacity_bytes():
    """Per-core VMEM capacity; conservative v7x floor if the query fails."""
    try:
        cap = int(pltpu.get_tpu_info().vmem_capacity_bytes)
        if cap >= (16 << 20):
            return cap
    except Exception:
        pass
    return 64 << 20


def _apply_act(y, activation):
    if activation == "relu":
        return jnp.maximum(y, 0.0)
    if activation == "tanh":
        return jnp.tanh(y)
    if activation == "sigmoid":
        return jax.nn.sigmoid(y)
    raise ValueError(f"unknown activation {activation!r}")


# ---------------------------------------------------------------------------
# Fully fused kernel: every layer in one pallas_call, weights VMEM-resident,
# intermediates live in vregs, only the final layer result is stored.
# ---------------------------------------------------------------------------
def _fused_mlp_kernel(*refs, num_layers, activation):
    """refs = (x, w0, b0, ..., w_{L-1}, b_{L-1}, out)."""
    x_ref = refs[0]
    out_ref = refs[-1]
    h = x_ref[...]
    for layer in range(num_layers):
        w_ref = refs[1 + 2 * layer]
        b_ref = refs[2 + 2 * layer]
        # Cast the f32 activation to the (bf16) weight dtype so the MXU runs
        # at native bf16 rate; accumulate in f32.
        h = jnp.dot(h.astype(w_ref.dtype), w_ref[...],
                    preferred_element_type=jnp.float32)
        h = h + b_ref[...]                    # (1, N_pad) broadcasts over rows
        if layer < num_layers - 1:            # output layer has no activation
            h = _apply_act(h, activation)
    out_ref[...] = h.astype(out_ref.dtype)


# ---------------------------------------------------------------------------
# Streamed fallback: one pallas_call per layer, M/N/K-tiled with f32 acc
# scratch.  Used when the all-weights-resident kernel would not fit VMEM
# (mainly v7x with its 64 MiB per TensorCore).
# ---------------------------------------------------------------------------
def _linear_act_kernel(x_ref, w_ref, b_ref, o_ref, acc_ref, *,
                       activation, apply_act):
    k = pl.program_id(2)

    @pl.when(k == 0)
    def _():
        acc_ref[...] = jnp.zeros_like(acc_ref)

    acc_ref[...] += jnp.dot(x_ref[...].astype(w_ref.dtype), w_ref[...],
                            preferred_element_type=jnp.float32)

    @pl.when(k == pl.num_programs(2) - 1)
    def _():
        y = acc_ref[...] + b_ref[...]
        if apply_act:
            y = _apply_act(y, activation)
        o_ref[...] = y.astype(o_ref.dtype)


def _mlp_forward_streamed(x, padded_params, activation, *, cap):
    """Layer-by-layer tiled matmul; intermediates round-trip through HBM."""
    B = x.shape[0]
    num_layers = len(padded_params)
    bm = max(8, min(512, _round_up(B, 8)))
    h = x
    for layer, (w, b) in enumerate(padded_params):
        K, N = w.shape
        bk = _pick_tile(K)   # K of layer 0 may be unpadded -> single K block
        bn = _pick_tile(N)   # N is always a multiple of 128
        apply_act = layer < num_layers - 1
        kernel = functools.partial(_linear_act_kernel, activation=activation,
                                   apply_act=apply_act)
        wsize = w.dtype.itemsize
        est = (2 * (bm * bk * 4 + bk * bn * wsize + bn * 4 + bm * bn * 4)
               + bm * bn * 4 + (8 << 20))
        vmem_limit = min(max(est, 32 << 20), int(0.95 * cap))
        h = pl.pallas_call(
            kernel,
            out_shape=jax.ShapeDtypeStruct((B, N), jnp.float32),
            grid=(pl.cdiv(B, bm), N // bn, K // bk),
            in_specs=[pl.BlockSpec((bm, bk), lambda i, j, k: (i, k)),
                      pl.BlockSpec((bk, bn), lambda i, j, k: (k, j)),
                      pl.BlockSpec((1, bn), lambda i, j, k: (0, j))],
            out_specs=pl.BlockSpec((bm, bn), lambda i, j, k: (i, j)),
            scratch_shapes=[pltpu.VMEM((bm, bn), jnp.float32)],
            compiler_params=pltpu.CompilerParams(
                dimension_semantics=("parallel", "parallel", "arbitrary"),
                vmem_limit_bytes=vmem_limit),
        )(h, w, b)
    # TODO(synk): for extremely large, non-128-divisible first-layer K, also
    # tile K instead of taking it as a single block.
    return h


# ---------------------------------------------------------------------------
# Wrapper: path selection (gridless / batch-tiled fused / streamed fallback).
# ---------------------------------------------------------------------------
def _fused_vmem_estimate(bm, in_f, out_pad, max_pad, weight_bytes, weight_bufs):
    io_bytes = 2 * bm * (in_f + out_pad) * 4       # double-buffered x/out blocks
    act_bytes = 4 * bm * max_pad * 4               # live h + compiler spill headroom
    return weight_bufs * weight_bytes + io_bytes + act_bytes + (8 << 20)


def mlp_forward_fused(x, padded_params, out_features, activation, *,
                      batch_block=512, small_batch_threshold=64,
                      force_streamed=False):
    x = jnp.asarray(x, jnp.float32)
    B, in_f = x.shape
    assert in_f == padded_params[0][0].shape[0], "input width mismatch"
    out_pad = padded_params[-1][0].shape[1]
    num_layers = len(padded_params)

    weight_bytes = sum(w.size * w.dtype.itemsize + b.size * b.dtype.itemsize
                       for (w, b) in padded_params)
    max_pad = max(max(w.shape) for (w, _) in padded_params)
    cap = _vmem_capacity_bytes()
    budget = int(0.75 * cap)

    kernel = functools.partial(_fused_mlp_kernel, num_layers=num_layers,
                               activation=activation)
    flat_params = [p for wb in padded_params for p in wb]

    def _finish(z_pad):
        # Output is lane-dense (out_pad multiple of 128); slice only if needed.
        return z_pad if out_pad == out_features else z_pad[:, :out_features]

    if force_streamed:
        return _finish(_mlp_forward_streamed(x, padded_params, activation, cap=cap))

    # --- Small batch: single shot, no grid / pipeline bookkeeping. ---
    if B <= small_batch_threshold:
        est = _fused_vmem_estimate(max(B, 8), in_f, out_pad, max_pad,
                                   weight_bytes, 1)
        if est <= budget:
            vmem_limit = min(max(est, 32 << 20), int(0.95 * cap))
            z_pad = pl.pallas_call(
                kernel,
                out_shape=jax.ShapeDtypeStruct((B, out_pad), jnp.float32),
                compiler_params=pltpu.CompilerParams(
                    vmem_limit_bytes=vmem_limit),
            )(x, *flat_params)
            return _finish(z_pad)

    # --- Batch-tiled fused path: >= 2 tiles so both v7x TCs get work. ---
    bm = max(8, min(batch_block, _round_up((B + 1) // 2, 8)))
    est = _fused_vmem_estimate(bm, in_f, out_pad, max_pad, weight_bytes, 2)
    if est <= budget:
        vmem_limit = min(max(est, 32 << 20), int(0.95 * cap))

        def run(single_buffer_weights):
            def wspec(shape):
                if single_buffer_weights:
                    # Constant-index weight/bias blocks only need one buffer.
                    return pl.BlockSpec(shape, lambda i: (0, 0),
                                        pipeline_mode=pl.Buffered(1))
                return pl.BlockSpec(shape, lambda i: (0, 0))

            in_specs = [pl.BlockSpec((bm, in_f), lambda i: (i, 0))]
            for (w, b) in padded_params:
                in_specs.append(wspec(w.shape))
                in_specs.append(wspec(b.shape))
            return pl.pallas_call(
                kernel,
                out_shape=jax.ShapeDtypeStruct((B, out_pad), jnp.float32),
                grid=(pl.cdiv(B, bm),),
                in_specs=in_specs,
                out_specs=pl.BlockSpec((bm, out_pad), lambda i: (i, 0)),
                compiler_params=pltpu.CompilerParams(
                    dimension_semantics=("parallel",),
                    vmem_limit_bytes=vmem_limit),
            )(x, *flat_params)

        try:
            z_pad = run(single_buffer_weights=True)
        except Exception:
            # pipeline_mode / pl.Buffered(1) unsupported in this JAX build ->
            # fall back to default double-buffered weight blocks.
            z_pad = run(single_buffer_weights=False)
        return _finish(z_pad)

    # --- Weights too large for VMEM residency (v7x guard): stream per layer. ---
    return _finish(_mlp_forward_streamed(x, padded_params, activation, cap=cap))


# ---------------------------------------------------------------------------
# Module port
# ---------------------------------------------------------------------------
class MLP:
    """JAX/Pallas port of the PyTorch MLP module's forward pass."""

    def __init__(self, input_size, hidden_sizes, output_size, act_func="relu",
                 key=None, param_dtype=jnp.bfloat16):
        if key is None:
            key = jax.random.PRNGKey(0)
        self.input_size = input_size
        self.hidden_sizes = list(hidden_sizes)
        if output_size is not None:
            self.output_size = output_size
            self.squeeze_output = False
        else:
            self.output_size = 1
            self.squeeze_output = True
        self.act_func = act_func
        self.param_dtype = param_dtype

        # Deterministic synthetic init matching nn.Linear's default
        # U(-1/sqrt(fan_in), 1/sqrt(fan_in)).
        dims = [self.input_size] + self.hidden_sizes + [self.output_size]
        self.params = []          # logical f32 (w_t (in,out), b (out,))
        self.padded_params = []   # kernel layout: (w (K*, N_pad) bf16, b (1, N_pad) f32)
        for layer, (in_size, out_size) in enumerate(zip(dims[:-1], dims[1:])):
            key, kw, kb = jax.random.split(key, 3)
            bound = 1.0 / (in_size ** 0.5)
            w_t = jax.random.uniform(kw, (in_size, out_size), jnp.float32,
                                     minval=-bound, maxval=bound)
            b = jax.random.uniform(kb, (out_size,), jnp.float32,
                                   minval=-bound, maxval=bound)
            self.params.append((w_t, b))

            # Layer-0 K stays logical so x needs no wrapper-side pad; K of
            # later layers is padded to the previous layer's padded N.  Zero
            # rows/cols keep the padded math exact (e.g. sigmoid(0)=0.5 in a
            # padded lane always hits a zero weight row of the next layer).
            k_pad = in_size if layer == 0 else _round_up(in_size, _LANE)
            n_pad = _round_up(out_size, _LANE)
            w_pad = jnp.pad(w_t, ((0, k_pad - in_size),
                                  (0, n_pad - out_size))).astype(param_dtype)
            b_pad = jnp.pad(b, (0, n_pad - out_size)).reshape(1, n_pad)
            self.padded_params.append((w_pad, b_pad.astype(jnp.float32)))

    def __call__(self, x, *, force_streamed=False):
        z = mlp_forward_fused(x, self.padded_params, self.output_size,
                              self.act_func, force_streamed=force_streamed)
        if self.squeeze_output:
            # axis=-1: squeeze only the size-1 feature dim (keeps batch when B==1).
            z = jnp.squeeze(z, axis=-1)
        return z


def _reference_forward(mlp, x):
    """Pure-JAX reference mirroring the kernel math (bf16 operands, f32 acc)."""
    act = {"relu": jax.nn.relu, "tanh": jnp.tanh,
           "sigmoid": jax.nn.sigmoid}[mlp.act_func]
    cd = mlp.param_dtype
    h = jnp.asarray(x, jnp.float32)
    n = len(mlp.params)
    for i, (w_t, b) in enumerate(mlp.params):
        y = jnp.dot(h.astype(cd), w_t.astype(cd),
                    preferred_element_type=jnp.float32) + b
        h = act(y) if i < n - 1 else y
    if mlp.squeeze_output:
        h = jnp.squeeze(h, axis=-1)
    return h


if __name__ == "__main__":
    key = jax.random.PRNGKey(0)
    kx, kx2, kx3, k1, k2, k3 = jax.random.split(key, 6)

    # 1) Small batch -> gridless fused path.
    mlp = MLP(32, [64, 32], 16, act_func="relu", key=k1)
    x = jax.random.normal(kx, (8, 32), jnp.float32)
    z = jax.block_until_ready(mlp(x))
    z_ref = _reference_forward(mlp, x)
    assert z.shape == (8, 16), z.shape
    assert jnp.allclose(z, z_ref, atol=1e-3, rtol=1e-3), "mismatch (small batch)"

    # 2) output_size=None -> scalar per example, squeezed on the feature axis.
    mlp_sq = MLP(32, [64], None, act_func="tanh", key=k2)
    z_sq = jax.block_until_ready(mlp_sq(x))
    z_sq_ref = _reference_forward(mlp_sq, x)
    assert z_sq.shape == (8,), z_sq.shape
    assert jnp.allclose(z_sq, z_sq_ref, atol=1e-3, rtol=1e-3), "mismatch (squeeze)"

    # 3) Ragged larger batch -> batch-tiled fused path (masked last tile,
    #    single-buffered weight blocks, "parallel" batch axis).
    x_big = jax.random.normal(kx2, (83, 32), jnp.float32)
    z_big = jax.block_until_ready(mlp(x_big))
    z_big_ref = _reference_forward(mlp, x_big)
    assert z_big.shape == (83, 16), z_big.shape
    assert jnp.allclose(z_big, z_big_ref, atol=1e-3, rtol=1e-3), "mismatch (tiled)"

    # 4) Forced streamed fallback (the v7x VMEM-budget escape hatch).
    mlp_sig = MLP(32, [48, 40], 10, act_func="sigmoid", key=k3)
    x3 = jax.random.normal(kx3, (48, 32), jnp.float32)
    z_st = jax.block_until_ready(mlp_sig(x3, force_streamed=True))
    z_st_ref = _reference_forward(mlp_sig, x3)
    assert z_st.shape == (48, 10), z_st.shape
    assert jnp.allclose(z_st, z_st_ref, atol=1e-3, rtol=1e-3), "mismatch (streamed)"

    print("KERNEL_OK")
</pallas_src>

<mosaic_0001>
module attributes {stable_mosaic.version = 11 : i64} {
  func.func @_fused_mlp_kernel(%arg0: memref<8x32xf32, #tpu.memory_space<vmem>>, %arg1: memref<32x128xbf16, #tpu.memory_space<vmem>>, %arg2: memref<1x128xf32, #tpu.memory_space<vmem>>, %arg3: memref<128x128xbf16, #tpu.memory_space<vmem>>, %arg4: memref<1x128xf32, #tpu.memory_space<vmem>>, %arg5: memref<128x128xbf16, #tpu.memory_space<vmem>>, %arg6: memref<1x128xf32, #tpu.memory_space<vmem>>, %arg7: memref<8x128xf32, #tpu.memory_space<vmem>>) attributes {dimension_semantics = [], scalar_prefetch = 0 : i64, scratch_operands = 0 : i64, tpu.core_type = #tpu.core_type<tc>} {
    %c0 = arith.constant 0 : index
    %c0_0 = arith.constant 0 : index
    %0 = vector.load %arg0[%c0, %c0_0] : memref<8x32xf32, #tpu.memory_space<vmem>>, vector<8x32xf32>
    %1 = arith.truncf %0 : vector<8x32xf32> to vector<8x32xbf16>
    %c0_1 = arith.constant 0 : index
    %c0_2 = arith.constant 0 : index
    %2 = vector.load %arg1[%c0_1, %c0_2] : memref<32x128xbf16, #tpu.memory_space<vmem>>, vector<32x128xbf16>
    %cst = arith.constant dense<0.000000e+00> : vector<8x128xf32>
    %3 = tpu.matmul %1, %2, %cst {dimension_numbers = #tpu.dot_dimension_numbers<[1], [0], [0], [1], [0, 0, 1, 1], [], []>} : vector<8x32xbf16>, vector<32x128xbf16>, vector<8x128xf32> -> vector<8x128xf32>
    %c0_3 = arith.constant 0 : index
    %c0_4 = arith.constant 0 : index
    %4 = vector.load %arg2[%c0_3, %c0_4] : memref<1x128xf32, #tpu.memory_space<vmem>>, vector<1x128xf32>
    %5 = vector.broadcast %4 : vector<1x128xf32> to vector<8x128xf32>
    %6 = arith.addf %3, %5 : vector<8x128xf32>
    %cst_5 = arith.constant 0.000000e+00 : f32
    %7 = vector.broadcast %cst_5 : f32 to vector<8x128xf32>
    %8 = arith.maximumf %6, %7 : vector<8x128xf32>
    %9 = arith.truncf %8 : vector<8x128xf32> to vector<8x128xbf16>
    %c0_6 = arith.constant 0 : index
    %c0_7 = arith.constant 0 : index
    %10 = vector.load %arg3[%c0_6, %c0_7] : memref<128x128xbf16, #tpu.memory_space<vmem>>, vector<128x128xbf16>
    %cst_8 = arith.constant dense<0.000000e+00> : vector<8x128xf32>
    %11 = tpu.matmul %9, %10, %cst_8 {dimension_numbers = #tpu.dot_dimension_numbers<[1], [0], [0], [1], [0, 0, 1, 1], [], []>} : vector<8x128xbf16>, vector<128x128xbf16>, vector<8x128xf32> -> vector<8x128xf32>
    %c0_9 = arith.constant 0 : index
    %c0_10 = arith.constant 0 : index
    %12 = vector.load %arg4[%c0_9, %c0_10] : memref<1x128xf32, #tpu.memory_space<vmem>>, vector<1x128xf32>
    %13 = vector.broadcast %12 : vector<1x128xf32> to vector<8x128xf32>
    %14 = arith.addf %11, %13 : vector<8x128xf32>
    %cst_11 = arith.constant 0.000000e+00 : f32
    %15 = vector.broadcast %cst_11 : f32 to vector<8x128xf32>
    %16 = arith.maximumf %14, %15 : vector<8x128xf32>
    %17 = arith.truncf %16 : vector<8x128xf32> to vector<8x128xbf16>
    %c0_12 = arith.constant 0 : index
    %c0_13 = arith.constant 0 : index
    %18 = vector.load %arg5[%c0_12, %c0_13] : memref<128x128xbf16, #tpu.memory_space<vmem>>, vector<128x128xbf16>
    %cst_14 = arith.constant dense<0.000000e+00> : vector<8x128xf32>
    %19 = tpu.matmul %17, %18, %cst_14 {dimension_numbers = #tpu.dot_dimension_numbers<[1], [0], [0], [1], [0, 0, 1, 1], [], []>} : vector<8x128xbf16>, vector<128x128xbf16>, vector<8x128xf32> -> vector<8x128xf32>
    %c0_15 = arith.constant 0 : index
    %c0_16 = arith.constant 0 : index
    %20 = vector.load %arg6[%c0_15, %c0_16] : memref<1x128xf32, #tpu.memory_space<vmem>>, vector<1x128xf32>
    %21 = vector.broadcast %20 : vector<1x128xf32> to vector<8x128xf32>
    %22 = arith.addf %19, %21 : vector<8x128xf32>
    %c0_17 = arith.constant 0 : index
    %c0_18 = arith.constant 0 : index
    %23 = vector.load %arg7[%c0_17, %c0_18] : memref<8x128xf32, #tpu.memory_space<vmem>>, vector<8x128xf32>
    tpu.vector_store %arg7[%c0_17, %c0_18], %22 {strides = array<i32>} : memref<8x128xf32, #tpu.memory_space<vmem>>, vector<8x128xf32>,
    return
  }
}

</mosaic_0001>

<llo_original>
// kernel: tpu_custom_call.1
$region0: #{tpu_custom_call.1}
  #allocation0 [shape = 'u32[]', space=smem, size = 0x4, offset = 0x4, fixed_abs, tag = 'smem constant byte address 0x4 - core index']
  #allocation1 [shape = 'u32[144,128]{1,0:T(1,128)}', space=vmem, size = 0x12000, scoped, tag = 'internal scratch']
  %s0 = inlined_call_operand.hbm [shape: f32[8,32], index: 0, kind: input, shape index: {}]
  %s1 = inlined_call_operand.hbm [shape: bf16[32,128], index: 1, kind: input, shape index: {}]
  %s2 = inlined_call_operand.vmem [shape: f32[1,128], index: 2, kind: input, shape index: {}]
  %s3 = inlined_call_operand.hbm [shape: bf16[128,128], index: 3, kind: input, shape index: {}]
  %s4 = inlined_call_operand.vmem [shape: f32[1,128], index: 4, kind: input, shape index: {}]
  %s5 = inlined_call_operand.hbm [shape: bf16[128,128], index: 5, kind: input, shape index: {}]
  %s6 = inlined_call_operand.vmem [shape: f32[1,128], index: 6, kind: input, shape index: {}]
  %s7 = inlined_call_operand.hbm [shape: f32[8,128], index: 7, kind: output, shape index: {}]
  %s8 = sld [smem:[#allocation0]]
  $region54: #{tpu_custom_call.1} parent=0
    _
  %s10 = ssub.s32 1, %s8
  %s11 = scalar_select 0, %s10, %s8
  $region1: #{tpu_custom_call.1} parent=0
    #allocation2 [shape = 'u8[4096]{0}', space=vmem, size = 0x1000, scoped, tag = 'input window, operand 0, single buffered']
    #allocation3 [shape = 's32[1]{0}', space=sflag, size = 0x4, scoped, tag = 'scoped memory for tpu_custom_call.1']
    #allocation4 [shape = 's32[1]{0}', space=sflag, size = 0x4, scoped, tag = 'scoped memory for tpu_custom_call.1']
    #allocation5 [shape = 'u8[8192]{0}', space=vmem, size = 0x2000, scoped, tag = 'input window, operand 1, single buffered']
    #allocation6 [shape = 's32[1]{0}', space=sflag, size = 0x4, scoped, tag = 'scoped memory for tpu_custom_call.1']
    #allocation7 [shape = 'u8[32768]{0}', space=vmem, size = 0x8000, scoped, tag = 'input window, operand 3, single buffered']
    #allocation8 [shape = 'u8[32768]{0}', space=vmem, size = 0x8000, scoped, tag = 'input window, operand 5, single buffered']
    #allocation9 [shape = 's32[1]{0}', space=sflag, size = 0x4, scoped, tag = 'scoped memory for tpu_custom_call.1']
    #allocation10 [shape = 'u8[4096]{0}', space=vmem, size = 0x1000, scoped, tag = 'output window, operand 0, single buffered']
    %12 = vsyncpa [#allocation3], 0
    %13 = vsyncpa [#allocation6], 0
    %14 = vsyncpa [#allocation9], 0
    %15 = vsyncpa [#allocation4], 0
    // Predicated region
    $region2: #{tpu_custom_call.1} parent=1 // pred_check
      _
    $region3: #{tpu_custom_call.1} parent=1 // pred_check_branch
      %17 = sbr.rel (0) target = $region5
    $region4: #{tpu_custom_call.1} parent=1 // pred_region
      %s19 = ssub.s32 128, 128
      %20 = vsyncadd [#allocation3], %s19
      %s22 = sshll.u32 [#allocation2], 4
      %s23 = int_to_ptr.vmem [resolvable:$true] %s22
      %25 = dma.hbm_to_vmem [thread:$0]  %s0, 128, %s23, [#allocation3]
    $region5: #{tpu_custom_call.1} parent=1 // pred_fallthru
      _
    // Predicated region
    $region6: #{tpu_custom_call.1} parent=1 // pred_check
      _
    $region7: #{tpu_custom_call.1} parent=1 // pred_check_branch
      %27 = sbr.rel (0) target = $region9
    $region8: #{tpu_custom_call.1} parent=1 // pred_region
      %s29 = ssub.s32 256, 256
      %30 = vsyncadd [#allocation6], %s29
      %s31 = sshll.u32 [#allocation5], 4
      %s32 = int_to_ptr.vmem [resolvable:$true] %s31
      %37 = dma.hbm_to_vmem [thread:$0]  %s1, 256, %s32, [#allocation6], 64, 64, 4
    $region9: #{tpu_custom_call.1} parent=1 // pred_fallthru
      _
    // Predicated region
    $region10: #{tpu_custom_call.1} parent=1 // pred_check
      _
    $region11: #{tpu_custom_call.1} parent=1 // pred_check_branch
      %39 = sbr.rel (0) target = $region13
    $region12: #{tpu_custom_call.1} parent=1 // pred_region
      _
    $region13: #{tpu_custom_call.1} parent=1 // pred_fallthru
      _
    // Predicated region
    $region14: #{tpu_custom_call.1} parent=1 // pred_check
      _
    $region15: #{tpu_custom_call.1} parent=1 // pred_check_branch
      %41 = sbr.rel (0) target = $region17
    $region16: #{tpu_custom_call.1} parent=1 // pred_region
      %s43 = ssub.s32 1024, 1024
      %44 = vsyncadd [#allocation6], %s43
      %s45 = sshll.u32 [#allocation7], 4
      %s46 = int_to_ptr.vmem [resolvable:$true] %s45
      %51 = dma.hbm_to_vmem [thread:$0]  %s3, 1024, %s46, [#allocation6], 64, 64, 4
    $region17: #{tpu_custom_call.1} parent=1 // pred_fallthru
      _
    // Predicated region
    $region18: #{tpu_custom_call.1} parent=1 // pred_check
      _
    $region19: #{tpu_custom_call.1} parent=1 // pred_check_branch
      %53 = sbr.rel (0) target = $region21
    $region20: #{tpu_custom_call.1} parent=1 // pred_region
      _
    $region21: #{tpu_custom_call.1} parent=1 // pred_fallthru
      _
    // Predicated region
    $region22: #{tpu_custom_call.1} parent=1 // pred_check
      _
    $region23: #{tpu_custom_call.1} parent=1 // pred_check_branch
      %55 = sbr.rel (0) target = $region25
    $region24: #{tpu_custom_call.1} parent=1 // pred_region
      %s57 = ssub.s32 1024, 1024
      %58 = vsyncadd [#allocation9], %s57
      %s59 = sshll.u32 [#allocation8], 4
      %s60 = int_to_ptr.vmem [resolvable:$true] %s59
      %65 = dma.hbm_to_vmem [thread:$0]  %s5, 1024, %s60, [#allocation9], 64, 64, 4
    $region25: #{tpu_custom_call.1} parent=1 // pred_fallthru
      _
    // Predicated region
    $region26: #{tpu_custom_call.1} parent=1 // pred_check
      _
    $region27: #{tpu_custom_call.1} parent=1 // pred_check_branch
      %67 = sbr.rel (0) target = $region29
    $region28: #{tpu_custom_call.1} parent=1 // pred_region
      _
    $region29: #{tpu_custom_call.1} parent=1 // pred_fallthru
      _
    // Predicated region
    $region30: #{tpu_custom_call.1} parent=1 // pred_check
      _
    $region31: #{tpu_custom_call.1} parent=1 // pred_check_branch
      %69 = sbr.rel (0) target = $region33
    $region32: #{tpu_custom_call.1} parent=1 // pred_region
      %70 = dma.done [#allocation3], 128
    $region33: #{tpu_custom_call.1} parent=1 // pred_fallthru
      _
    // Predicated region
    $region34: #{tpu_custom_call.1} parent=1 // pred_check
      _
    $region35: #{tpu_custom_call.1} parent=1 // pred_check_branch
      %72 = sbr.rel (0) target = $region37
    $region36: #{tpu_custom_call.1} parent=1 // pred_region
      %73 = dma.done [#allocation6], 256
    $region37: #{tpu_custom_call.1} parent=1 // pred_fallthru
      _
    // Predicated region
    $region38: #{tpu_custom_call.1} parent=1 // pred_check
      _
    $region39: #{tpu_custom_call.1} parent=1 // pred_check_branch
      %75 = sbr.rel (0) target = $region41
    $region40: #{tpu_custom_call.1} parent=1 // pred_region
      %76 = dma.done [#allocation6], 1024
    $region41: #{tpu_custom_call.1} parent=1 // pred_fallthru
      _
    // Predicated region
    $region42: #{tpu_custom_call.1} parent=1 // pred_check
      _
    $region43: #{tpu_custom_call.1} parent=1 // pred_check_branch
      %78 = sbr.rel (0) target = $region45
    $region44: #{tpu_custom_call.1} parent=1 // pred_region
      %79 = dma.done [#allocation9], 1024
    $region45: #{tpu_custom_call.1} parent=1 // pred_fallthru
      _
    %v81 = vld [vmem:[#allocation2] sm:$0xff]
    %v82 = vpack.c.bf16 %v81, %v81
    %v83 = vld [vmem:[#allocation5] sm:$0xf]
    %v84 = vld [vmem:[#allocation5 + $0x4] sm:$0xf]
    %v85 = vld [vmem:[#allocation5 + $0x8] sm:$0xf]
    %v86 = vld [vmem:[#allocation5 + $0xc] sm:$0xf]
    %v87 = vld [vmem:[%s2] sm:$0x1]
    %v89 = vlaneseq
    %v90 = vshrl.u32 %v89, 7
    %v91 = vsub.s32 0, %v90
    %v92 = vrot.slane %v87, %v91
    %v98 = vunpack.c.l.b16 %v83
    %v99 = vunpack.c.l.b16 %v84
    %v100 = vunpack.c.l.b16 %v85
    %v101 = vunpack.c.l.b16 %v86
    %v102 = vpack.c.b16 %v99, %v98
    %v103 = vpack.c.b16 %v101, %v100
    %vm106 = vcmask 261120
    %v108 = vsel %vm106, %v82, 0
    %110 = vmatprep.subr.bf16.mxu0 0
    %111 = vmatpush1.bf16.msra.mxu0 %v102
    %112 = vmatprep.subr.bf16.mxu0 0
    %113 = vmatpush1.bf16.msra.mxu0 %v103
    %114 = vmatprep.subr.bf16.mxu0 0
    %115 = vmatpush1.bf16.msra.mxu0 0
    %116 = vmatprep.subr.bf16.mxu0 0
    %117 = vmatpush1.bf16.msra.mxu0 0
    %118 = vmatprep.subr.bf16.mxu0 0
    %119 = vmatpush1.bf16.msra.mxu0 0
    %120 = vmatprep.subr.bf16.mxu0 0
    %121 = vmatpush1.bf16.msra.mxu0 0
    %122 = vmatprep.subr.bf16.mxu0 0
    %123 = vmatpush1.bf16.msra.mxu0 0
    %124 = vmatprep.subr.bf16.mxu0 0
    %125 = vmatpush1.bf16.msra.mxu0 0
    %126 = vmatprep.subr.bf16.mxu0 0
    %127 = vmatpush1.bf16.msra.mxu0 0
    %128 = vmatprep.subr.bf16.mxu0 0
    %129 = vmatpush1.bf16.msra.mxu0 0
    %130 = vmatprep.subr.bf16.mxu0 0
    %131 = vmatpush1.bf16.msra.mxu0 0
    %132 = vmatprep.subr.bf16.mxu0 0
    %133 = vmatpush1.bf16.msra.mxu0 0
    %134 = vmatprep.subr.bf16.mxu0 0
    %135 = vmatpush1.bf16.msra.mxu0 0
    %136 = vmatprep.subr.bf16.mxu0 0
    %137 = vmatpush1.bf16.msra.mxu0 0
    %138 = vmatprep.subr.bf16.mxu0 0
    %139 = vmatpush1.bf16.msra.mxu0 0
    %140 = vmatprep.subr.bf16.mxu0 0
    %141 = vmatpush1.bf16.msra.mxu0 0
    %142 = vmatprep.mubr.bf16.mxu0 0
    %143 = vmatmul.mubr.bf16.gmra.mrb[0].mxu0 %v108
    %v144 = vpop.f32.mrb[0].mxu0
    %v145 = vadd.f32 %v92, %v144
    %v146 = vpop.f32.mrb[0].mxu0
    %v147 = vpop.f32.mrb[0].mxu0
    %v148 = vpop.f32.mrb[0].mxu0
    %149 = vdwg.mxu0
    %v150 = vmax.f32 %v145, 0.0
    %v151 = vpack.c.bf16 %v150, %v150
    %v152 = vld [vmem:[#allocation7] sm:$0xf]
    %v153 = vld [vmem:[#allocation7 + $0x4] sm:$0xf]
    %v154 = vld [vmem:[#allocation7 + $0x8] sm:$0xf]
    %v155 = vld [vmem:[#allocation7 + $0xc] sm:$0xf]
    %v156 = vld [vmem:[#allocation7 + $0x10] sm:$0xf]
    %v157 = vld [vmem:[#allocation7 + $0x14] sm:$0xf]
    %v158 = vld [vmem:[#allocation7 + $0x18] sm:$0xf]
    %v159 = vld [vmem:[#allocation7 + $0x1c] sm:$0xf]
    %v160 = vld [vmem:[#allocation7 + $0x20] sm:$0xf]
    %v161 = vld [vmem:[#allocation7 + $0x24] sm:$0xf]
    %v162 = vld [vmem:[#allocation7 + $0x28] sm:$0xf]
    %v163 = vld [vmem:[#allocation7 + $0x2c] sm:$0xf]
    %v164 = vld [vmem:[#allocation7 + $0x30] sm:$0xf]
    %v165 = vld [vmem:[#allocation7 + $0x34] sm:$0xf]
    %v166 = vld [vmem:[#allocation7 + $0x38] sm:$0xf]
    %v167 = vld [vmem:[#allocation7 + $0x3c] sm:$0xf]
    %v168 = vld [vmem:[%s4] sm:$0x1]
    %v170 = vlaneseq
    %v171 = vshrl.u32 %v170, 7
    %v172 = vsub.s32 0, %v171
    %v173 = vrot.slane %v168, %v172
    %v191 = vunpack.c.l.b16 %v152
    %v192 = vunpack.c.l.b16 %v153
    %v193 = vunpack.c.l.b16 %v154
    %v194 = vunpack.c.l.b16 %v155
    %v195 = vunpack.c.l.b16 %v156
    %v196 = vunpack.c.l.b16 %v157
    %v197 = vunpack.c.l.b16 %v158
    %v198 = vunpack.c.l.b16 %v159
    %v199 = vunpack.c.l.b16 %v160
    %v200 = vunpack.c.l.b16 %v161
    %v201 = vunpack.c.l.b16 %v162
    %v202 = vunpack.c.l.b16 %v163
    %v203 = vunpack.c.l.b16 %v164
    %v204 = vunpack.c.l.b16 %v165
    %v205 = vunpack.c.l.b16 %v166
    %v206 = vunpack.c.l.b16 %v167
    %v207 = vpack.c.b16 %v192, %v191
    %v208 = vpack.c.b16 %v194, %v193
    %v209 = vpack.c.b16 %v196, %v195
    %v210 = vpack.c.b16 %v198, %v197
    %v211 = vpack.c.b16 %v200, %v199
    %v212 = vpack.c.b16 %v202, %v201
    %v213 = vpack.c.b16 %v204, %v203
    %v214 = vpack.c.b16 %v206, %v205
    %223 = vmatprep.subr.bf16.mxu0 0
    %224 = vmatpush1.bf16.msra.mxu0 %v207
    %225 = vmatprep.subr.bf16.mxu0 0
    %226 = vmatpush1.bf16.msra.mxu0 %v208
    %227 = vmatprep.subr.bf16.mxu0 0
    %228 = vmatpush1.bf16.msra.mxu0 %v209
    %229 = vmatprep.subr.bf16.mxu0 0
    %230 = vmatpush1.bf16.msra.mxu0 %v210
    %231 = vmatprep.subr.bf16.mxu0 0
    %232 = vmatpush1.bf16.msra.mxu0 %v211
    %233 = vmatprep.subr.bf16.mxu0 0
    %234 = vmatpush1.bf16.msra.mxu0 %v212
    %235 = vmatprep.subr.bf16.mxu0 0
    %236 = vmatpush1.bf16.msra.mxu0 %v213
    %237 = vmatprep.subr.bf16.mxu0 0
    %238 = vmatpush1.bf16.msra.mxu0 %v214
    %239 = vmatprep.subr.bf16.mxu0 0
    %240 = vmatpush1.bf16.msra.mxu0 0
    %241 = vmatprep.subr.bf16.mxu0 0
    %242 = vmatpush1.bf16.msra.mxu0 0
    %243 = vmatprep.subr.bf16.mxu0 0
    %244 = vmatpush1.bf16.msra.mxu0 0
    %245 = vmatprep.subr.bf16.mxu0 0
    %246 = vmatpush1.bf16.msra.mxu0 0
    %247 = vmatprep.subr.bf16.mxu0 0
    %248 = vmatpush1.bf16.msra.mxu0 0
    %249 = vmatprep.subr.bf16.mxu0 0
    %250 = vmatpush1.bf16.msra.mxu0 0
    %251 = vmatprep.subr.bf16.mxu0 0
    %252 = vmatpush1.bf16.msra.mxu0 0
    %253 = vmatprep.subr.bf16.mxu0 0
    %254 = vmatpush1.bf16.msra.mxu0 0
    %255 = vmatprep.mubr.bf16.mxu0 0
    %256 = vmatmul.mubr.bf16.gmra.mrb[0].mxu0 %v151
    %v257 = vpop.f32.mrb[0].mxu0
    %v258 = vadd.f32 %v173, %v257
    %v259 = vpop.f32.mrb[0].mxu0
    %v260 = vpop.f32.mrb[0].mxu0
    %v261 = vpop.f32.mrb[0].mxu0
    %262 = vdwg.mxu0
    %v263 = vmax.f32 %v258, 0.0
    %v264 = vpack.c.bf16 %v263, %v263
    %v265 = vld [vmem:[#allocation8] sm:$0xf]
    %v266 = vld [vmem:[#allocation8 + $0x4] sm:$0xf]
    %v267 = vld [vmem:[#allocation8 + $0x8] sm:$0xf]
    %v268 = vld [vmem:[#allocation8 + $0xc] sm:$0xf]
    %v269 = vld [vmem:[#allocation8 + $0x10] sm:$0xf]
    %v270 = vld [vmem:[#allocation8 + $0x14] sm:$0xf]
    %v271 = vld [vmem:[#allocation8 + $0x18] sm:$0xf]
    %v272 = vld [vmem:[#allocation8 + $0x1c] sm:$0xf]
    %v273 = vld [vmem:[#allocation8 + $0x20] sm:$0xf]
    %v274 = vld [vmem:[#allocation8 + $0x24] sm:$0xf]
    %v275 = vld [vmem:[#allocation8 + $0x28] sm:$0xf]
    %v276 = vld [vmem:[#allocation8 + $0x2c] sm:$0xf]
    %v277 = vld [vmem:[#allocation8 + $0x30] sm:$0xf]
    %v278 = vld [vmem:[#allocation8 + $0x34] sm:$0xf]
    %v279 = vld [vmem:[#allocation8 + $0x38] sm:$0xf]
    %v280 = vld [vmem:[#allocation8 + $0x3c] sm:$0xf]
    %v281 = vld [vmem:[%s6] sm:$0x1]
    %v283 = vlaneseq
    %v284 = vshrl.u32 %v283, 7
    %v285 = vsub.s32 0, %v284
    %v286 = vrot.slane %v281, %v285
    %v304 = vunpack.c.l.b16 %v265
    %v305 = vunpack.c.l.b16 %v266
    %v306 = vunpack.c.l.b16 %v267
    %v307 = vunpack.c.l.b16 %v268
    %v308 = vunpack.c.l.b16 %v269
    %v309 = vunpack.c.l.b16 %v270
    %v310 = vunpack.c.l.b16 %v271
    %v311 = vunpack.c.l.b16 %v272
    %v312 = vunpack.c.l.b16 %v273
    %v313 = vunpack.c.l.b16 %v274
    %v314 = vunpack.c.l.b16 %v275
    %v315 = vunpack.c.l.b16 %v276
    %v316 = vunpack.c.l.b16 %v277
    %v317 = vunpack.c.l.b16 %v278
    %v318 = vunpack.c.l.b16 %v279
    %v319 = vunpack.c.l.b16 %v280
    %v320 = vpack.c.b16 %v305, %v304
    %v321 = vpack.c.b16 %v307, %v306
    %v322 = vpack.c.b16 %v309, %v308
    %v323 = vpack.c.b16 %v311, %v310
    %v324 = vpack.c.b16 %v313, %v312
    %v325 = vpack.c.b16 %v315, %v314
    %v326 = vpack.c.b16 %v317, %v316
    %v327 = vpack.c.b16 %v319, %v318
    %336 = vmatprep.subr.bf16.mxu0 0
    %337 = vmatpush1.bf16.msra.mxu0 %v320
    %338 = vmatprep.subr.bf16.mxu0 0
    %339 = vmatpush1.bf16.msra.mxu0 %v321
    %340 = vmatprep.subr.bf16.mxu0 0
    %341 = vmatpush1.bf16.msra.mxu0 %v322
    %342 = vmatprep.subr.bf16.mxu0 0
    %343 = vmatpush1.bf16.msra.mxu0 %v323
    %344 = vmatprep.subr.bf16.mxu0 0
    %345 = vmatpush1.bf16.msra.mxu0 %v324
    %346 = vmatprep.subr.bf16.mxu0 0
    %347 = vmatpush1.bf16.msra.mxu0 %v325
    %348 = vmatprep.subr.bf16.mxu0 0
    %349 = vmatpush1.bf16.msra.mxu0 %v326
    %350 = vmatprep.subr.bf16.mxu0 0
    %351 = vmatpush1.bf16.msra.mxu0 %v327
    %352 = vmatprep.subr.bf16.mxu0 0
    %353 = vmatpush1.bf16.msra.mxu0 0
    %354 = vmatprep.subr.bf16.mxu0 0
    %355 = vmatpush1.bf16.msra.mxu0 0
    %356 = vmatprep.subr.bf16.mxu0 0
    %357 = vmatpush1.bf16.msra.mxu0 0
    %358 = vmatprep.subr.bf16.mxu0 0
    %359 = vmatpush1.bf16.msra.mxu0 0
    %360 = vmatprep.subr.bf16.mxu0 0
    %361 = vmatpush1.bf16.msra.mxu0 0
    %362 = vmatprep.subr.bf16.mxu0 0
    %363 = vmatpush1.bf16.msra.mxu0 0
    %364 = vmatprep.subr.bf16.mxu0 0
    %365 = vmatpush1.bf16.msra.mxu0 0
    %366 = vmatprep.subr.bf16.mxu0 0
    %367 = vmatpush1.bf16.msra.mxu0 0
    %368 = vmatprep.mubr.bf16.mxu0 0
    %369 = vmatmul.mubr.bf16.gmra.mrb[0].mxu0 %v264
    %v370 = vpop.f32.mrb[0].mxu0
    %v371 = vadd.f32 %v286, %v370
    %v372 = vpop.f32.mrb[0].mxu0
    %v373 = vpop.f32.mrb[0].mxu0
    %v374 = vpop.f32.mrb[0].mxu0
    %375 = vdwg.mxu0
    %376 = vst [vmem:[#allocation10] sm:$0xff] %v371
    // Predicated region
    $region46: #{tpu_custom_call.1} parent=1 // pred_check
      _
    $region47: #{tpu_custom_call.1} parent=1 // pred_check_branch
      %378 = sbr.rel (0) target = $region49
    $region48: #{tpu_custom_call.1} parent=1 // pred_region
      %s380 = ssub.s32 128, 128
      %381 = vsyncadd [#allocation4], %s380
      %s383 = sshll.u32 [#allocation10], 4
      %s384 = int_to_ptr.vmem [resolvable:$true] %s383
      %386 = dma.vmem_to_hbm [thread:$0]  %s384, 128, %s7, [#allocation4]
    $region49: #{tpu_custom_call.1} parent=1 // pred_fallthru
      _
    // Predicated region
    $region50: #{tpu_custom_call.1} parent=1 // pred_check
      _
    $region51: #{tpu_custom_call.1} parent=1 // pred_check_branch
      %388 = sbr.rel (0) target = $region53
    $region52: #{tpu_custom_call.1} parent=1 // pred_region
      %389 = dma.done [#allocation4], 128
    $region53: #{tpu_custom_call.1} parent=1 // pred_fallthru
      _
    %390 = vsyncpa [#allocation3], 1
    %391 = vsyncpa [#allocation6], 1
    %392 = vsyncpa [#allocation9], 1
    %393 = vsyncpa [#allocation4], 1

</llo_original>
